<compile_context>
chip_gen: v5e
topology: v5e:2x2
jax: 0.10.0
libtpu: 0.0.40
codegen_flags: <defaults>
</compile_context>

<pallas_src>
import jax
import jax.numpy as jnp
from jax import lax
from jax.experimental import pallas as pl
from jax.experimental.pallas import tpu as pltpu

# --------------------------- model configuration ----------------------------

C_FEAT = 32                  # backbone stem channels
NUM_CLASSES = 8              # synthetic class count (COCO would be 91); 0 = bg
MASK_SIZE = 14               # Mask R-CNN mask head resolution
K_DET = 10                   # detections kept (stand-in for post-NMS top-k)
KH = KW = 3                  # stem conv kernel

N_BOXCLS = 4 + NUM_CLASSES                 # 12  (box deltas + class logits)
FEAT_OFF = N_BOXCLS                        # feats start at column 12
N_SLIM = N_BOXCLS + C_FEAT                 # 44  (box | cls | feats)
N_PAD = 128                                # lane-dense output width (1 vreg)


# ------------------------------ Pallas kernel --------------------------------


def _detector_kernel(a_ref, wc_ref, bc_ref, wh_ref, bh_ref, o_ref):
    """One (tm, K) im2col tile -> stem conv + ReLU -> fused heads, in VMEM.

    a_ref : (tm, K)        bf16  im2col'd activations
    wc_ref: (K, C_FEAT)    bf16  stem conv weight
    bc_ref: (1, C_FEAT)    f32   stem conv bias
    wh_ref: (C_FEAT, 128)  bf16  [box | cls | I_32 (feat pass-through) | 0]
    bh_ref: (1, 128)       f32   fused head bias
    o_ref : (tm, 128)      bf16  lane-dense [box | cls | feats | pad] slab
    """
    feats = jnp.dot(a_ref[...], wc_ref[...], preferred_element_type=jnp.float32)
    feats = jnp.maximum(feats + bc_ref[...], 0.0)               # stem ReLU
    heads = jnp.dot(feats.astype(jnp.bfloat16), wh_ref[...],
                    preferred_element_type=jnp.float32)
    o_ref[...] = (heads + bh_ref[...]).astype(jnp.bfloat16)


def _choose_tm(m, cap=8192, min_tiles=4):
    """Largest tile (multiple of 16, <= cap) dividing m; prefers >= min_tiles
    grid tiles so v7x megacore gets several tiles per core.  Falls back to a
    non-divisor (caller pads) only if no divisor >= upper/2 exists."""
    if m <= 16:
        return 16
    if m >= 16 * min_tiles:
        upper = min(cap, m // min_tiles)
    else:
        upper = (m + 15) // 16 * 16
    upper = max(16, (upper // 16) * 16)
    lo = max(16, upper // 2)
    for tm in range(upper, lo - 1, -16):
        if m % tm == 0:
            return tm
    return upper


def fused_detector(a, w_conv, b_conv, w_heads, b_heads):
    """out = relu(A @ Wc + bc) @ Wh + bh  (bf16 store), tiled over rows of A."""
    m, k = a.shape
    kc, cf = w_conv.shape
    cf2, n = w_heads.shape
    assert k == kc and cf == cf2, (a.shape, w_conv.shape, w_heads.shape)

    tm = _choose_tm(m)
    m_pad = pl.cdiv(m, tm) * tm
    if m_pad != m:
        # Ragged fallback only; pad rows are sliced off below, so their
        # bias-driven scores can never reach top_k.
        a = jnp.pad(a, ((0, m_pad - m), (0, 0)))

    out = pl.pallas_call(
        _detector_kernel,
        out_shape=jax.ShapeDtypeStruct((m_pad, n), jnp.bfloat16),
        grid=(m_pad // tm,),
        in_specs=[
            pl.BlockSpec((tm, k), lambda i: (i, 0)),    # A: tile rows
            pl.BlockSpec((kc, cf), lambda i: (0, 0)),   # stem weight (whole)
            pl.BlockSpec((1, cf), lambda i: (0, 0)),    # stem bias
            pl.BlockSpec((cf, n), lambda i: (0, 0)),    # fused head weight
            pl.BlockSpec((1, n), lambda i: (0, 0)),     # fused head bias
        ],
        out_specs=pl.BlockSpec((tm, n), lambda i: (i, 0)),
        compiler_params=pltpu.CompilerParams(
            dimension_semantics=("parallel",)),
    )(a, w_conv, b_conv, w_heads, b_heads)
    return out[:m] if m_pad != m else out


# ------------------------------ parameters -----------------------------------


def init_params(key):
    ks = jax.random.split(key, 4)
    s = 0.05
    box_w = jax.random.normal(ks[1], (C_FEAT, 4), jnp.float32) * s
    cls_w = jax.random.normal(ks[2], (C_FEAT, NUM_CLASSES), jnp.float32) * s
    mask_w = jax.random.normal(
        ks[3], (C_FEAT, MASK_SIZE * MASK_SIZE), jnp.float32) * s
    # Fused kernel head: [box | cls | identity feat pass-through], zero-padded
    # to 128 lanes.  The mask head weight stays OUT of the kernel and is
    # applied to the K_DET selected rows only.
    heads_w = jnp.concatenate([box_w, cls_w, jnp.eye(C_FEAT, dtype=jnp.float32)],
                              axis=1)                          # (32, 44)
    heads_w = jnp.pad(heads_w, ((0, 0), (0, N_PAD - N_SLIM)))  # (32, 128)
    heads_b = jnp.zeros((1, N_PAD), jnp.float32)
    return dict(
        conv_w=jax.random.normal(ks[0], (C_FEAT, 3, KH, KW), jnp.float32) * s,
        conv_b=jnp.zeros((C_FEAT,), jnp.float32),
        heads_w=heads_w,
        heads_b=heads_b,
        mask_w=mask_w,                                         # (32, 196)
        mask_b=jnp.zeros((MASK_SIZE * MASK_SIZE,), jnp.float32),
    )


# ------------------------------ forward pass ----------------------------------


def trace_wrapper_forward(params, x_nchw):
    """Mirror of TraceWrapper.forward: returns (boxes, scores, labels, masks)."""
    n, c, h, w = x_nchw.shape
    m = n * h * w
    k_im2col = c * KH * KW

    # im2col patches emitted directly in NHWC order; input cast to bf16 first
    # so the 9x-sized patch intermediate is materialized in bf16.
    patches = lax.conv_general_dilated_patches(
        x_nchw.astype(jnp.bfloat16), filter_shape=(KH, KW),
        window_strides=(1, 1), padding="SAME",
        dimension_numbers=("NCHW", "OIHW", "NHWC"))          # (N, H, W, C*kh*kw)
    a = patches.reshape(m, k_im2col)                          # bf16, no copy

    w_conv = params["conv_w"].reshape(C_FEAT, k_im2col).T.astype(jnp.bfloat16)
    b_conv = params["conv_b"].reshape(1, C_FEAT)
    w_heads = params["heads_w"].astype(jnp.bfloat16)          # (C_FEAT, 128)
    b_heads = params["heads_b"]                               # (1, 128)

    # ---- fused stem conv + box/cls heads + feat pass-through (one kernel) ---
    head_out = fused_detector(a, w_conv, b_conv, w_heads, b_heads)   # (M, 128)

    deltas = head_out[:, 0:4].astype(jnp.float32)             # (M, 4)
    logits = head_out[:, 4:N_BOXCLS].astype(jnp.float32)      # (M, NC)
    feats = head_out[:, FEAT_OFF:N_SLIM]                      # (M, 32) bf16

    # ---- post-processing glue (plain JAX) -----------------------------------
    probs = jax.nn.softmax(logits, axis=-1)
    fg = probs[:, 1:]                                          # drop background
    scores_all = jnp.max(fg, axis=-1)
    labels_all = (jnp.argmax(fg, axis=-1) + 1).astype(jnp.int32)

    # decode boxes from per-pixel anchors (x1, y1, x2, y2) in image coords
    ys, xs = jnp.meshgrid(jnp.arange(h, dtype=jnp.float32),
                          jnp.arange(w, dtype=jnp.float32), indexing="ij")
    cx = jnp.tile(xs.reshape(-1), n)
    cy = jnp.tile(ys.reshape(-1), n)
    box_w_sz = jnp.exp(jnp.clip(deltas[:, 2], -4.0, 4.0)) * 2.0
    box_h_sz = jnp.exp(jnp.clip(deltas[:, 3], -4.0, 4.0)) * 2.0
    x1 = jnp.clip(cx + deltas[:, 0] - box_w_sz * 0.5, 0.0, w - 1.0)
    y1 = jnp.clip(cy + deltas[:, 1] - box_h_sz * 0.5, 0.0, h - 1.0)
    x2 = jnp.clip(cx + deltas[:, 0] + box_w_sz * 0.5, 0.0, w - 1.0)
    y2 = jnp.clip(cy + deltas[:, 1] + box_h_sz * 0.5, 0.0, h - 1.0)
    boxes_all = jnp.stack([x1, y1, x2, y2], axis=-1)

    # TODO(synk): torchvision Mask R-CNN applies RPN proposal filtering,
    # RoIAlign and per-class NMS here; those have no clean Pallas equivalent,
    # so a simple global top-K by score is used to select detections.
    scores, order = lax.top_k(scores_all, K_DET)
    boxes = boxes_all[order]
    labels = labels_all[order]

    # Deferred mask head: only the K_DET selected rows go through the
    # (32 -> 196) projection + sigmoid (identical math to projecting all rows
    # and then selecting, up to bf16 rounding of the stored feats).
    feats_sel = feats[order].astype(jnp.float32)               # (K, 32)
    mask_logits = feats_sel @ params["mask_w"] + params["mask_b"]
    masks = jax.nn.sigmoid(mask_logits).reshape(K_DET, 1, MASK_SIZE, MASK_SIZE)

    # NOTE: torchvision returns int64 labels; int32 is kept here because x64 is
    # disabled by default on TPU JAX — cast outside if a consumer needs it.
    # dict_to_tuple(out[0]) with 'masks' present -> 4-tuple
    return boxes, scores, labels, masks


# ------------------------------------ main -----------------------------------

if __name__ == "__main__":
    key = jax.random.PRNGKey(0)
    k_param, k_inp = jax.random.split(key)

    params = init_params(k_param)
    # PyTorch reference uses (1, 3, 600, 600) uniform[0, 250); use small 32x32
    # here (M = 1024 -> 4 grid tiles at tm=256, so v7x megacore is exercised).
    x = jax.random.uniform(k_inp, (1, 3, 32, 32), dtype=jnp.float32,
                           minval=0.0, maxval=250.0)

    fwd = jax.jit(trace_wrapper_forward)
    boxes, scores, labels, masks = fwd(params, x)
    jax.block_until_ready((boxes, scores, labels, masks))

    assert boxes.shape == (K_DET, 4) and boxes.dtype == jnp.float32
    assert scores.shape == (K_DET,) and scores.dtype == jnp.float32
    assert labels.shape == (K_DET,)
    assert masks.shape == (K_DET, 1, MASK_SIZE, MASK_SIZE)
    assert bool(jnp.all(jnp.isfinite(boxes)))
    assert bool(jnp.all(jnp.isfinite(masks)))
    print("KERNEL_OK")
</pallas_src>

<mosaic_0001>
module attributes {stable_mosaic.version = 11 : i64} {
  func.func @_detector_kernel(%arg0: i32, %arg1: memref<256x27xbf16, #tpu.memory_space<vmem>>, %arg2: memref<27x32xbf16, #tpu.memory_space<vmem>>, %arg3: memref<1x32xf32, #tpu.memory_space<vmem>>, %arg4: memref<32x128xbf16, #tpu.memory_space<vmem>>, %arg5: memref<1x128xf32, #tpu.memory_space<vmem>>, %arg6: memref<256x128xbf16, #tpu.memory_space<vmem>>) attributes {dimension_semantics = [#tpu.dimension_semantics<parallel>], iteration_bounds = array<i64: 4>, scalar_prefetch = 0 : i64, scratch_operands = 0 : i64, tpu.core_type = #tpu.core_type<tc>, window_params = [{transform_indices = @transform_0, window_bounds = array<i64: 256, 27>}, {pipeline_mode = #tpu.pipeline_mode<synchronous>, transform_indices = @transform_1, window_bounds = array<i64: 27, 32>}, {pipeline_mode = #tpu.pipeline_mode<synchronous>, transform_indices = @transform_2, window_bounds = array<i64: 1, 32>}, {pipeline_mode = #tpu.pipeline_mode<synchronous>, transform_indices = @transform_3, window_bounds = array<i64: 32, 128>}, {pipeline_mode = #tpu.pipeline_mode<synchronous>, transform_indices = @transform_4, window_bounds = array<i64: 1, 128>}, {transform_indices = @transform_5, window_bounds = array<i64: 256, 128>}]} {
    %c0 = arith.constant 0 : index
    %c0_0 = arith.constant 0 : index
    %0 = vector.load %arg1[%c0, %c0_0] : memref<256x27xbf16, #tpu.memory_space<vmem>>, vector<256x27xbf16>
    %c0_1 = arith.constant 0 : index
    %c0_2 = arith.constant 0 : index
    %1 = vector.load %arg2[%c0_1, %c0_2] : memref<27x32xbf16, #tpu.memory_space<vmem>>, vector<27x32xbf16>
    %cst = arith.constant dense<0.000000e+00> : vector<256x32xf32>
    %2 = tpu.matmul %0, %1, %cst {dimension_numbers = #tpu.dot_dimension_numbers<[1], [0], [0], [1], [0, 0, 1, 1], [], []>} : vector<256x27xbf16>, vector<27x32xbf16>, vector<256x32xf32> -> vector<256x32xf32>
    %c0_3 = arith.constant 0 : index
    %c0_4 = arith.constant 0 : index
    %3 = vector.load %arg3[%c0_3, %c0_4] : memref<1x32xf32, #tpu.memory_space<vmem>>, vector<1x32xf32>
    %4 = vector.broadcast %3 : vector<1x32xf32> to vector<256x32xf32>
    %5 = arith.addf %2, %4 : vector<256x32xf32>
    %cst_5 = arith.constant 0.000000e+00 : f32
    %6 = vector.broadcast %cst_5 : f32 to vector<256x32xf32>
    %7 = arith.maximumf %5, %6 : vector<256x32xf32>
    %8 = arith.truncf %7 : vector<256x32xf32> to vector<256x32xbf16>
    %c0_6 = arith.constant 0 : index
    %c0_7 = arith.constant 0 : index
    %9 = vector.load %arg4[%c0_6, %c0_7] : memref<32x128xbf16, #tpu.memory_space<vmem>>, vector<32x128xbf16>
    %cst_8 = arith.constant dense<0.000000e+00> : vector<256x128xf32>
    %10 = tpu.matmul %8, %9, %cst_8 {dimension_numbers = #tpu.dot_dimension_numbers<[1], [0], [0], [1], [0, 0, 1, 1], [], []>} : vector<256x32xbf16>, vector<32x128xbf16>, vector<256x128xf32> -> vector<256x128xf32>
    %c0_9 = arith.constant 0 : index
    %c0_10 = arith.constant 0 : index
    %11 = vector.load %arg5[%c0_9, %c0_10] : memref<1x128xf32, #tpu.memory_space<vmem>>, vector<1x128xf32>
    %12 = vector.broadcast %11 : vector<1x128xf32> to vector<256x128xf32>
    %13 = arith.addf %10, %12 : vector<256x128xf32>
    %14 = arith.truncf %13 : vector<256x128xf32> to vector<256x128xbf16>
    %c0_11 = arith.constant 0 : index
    %c0_12 = arith.constant 0 : index
    %15 = vector.load %arg6[%c0_11, %c0_12] : memref<256x128xbf16, #tpu.memory_space<vmem>>, vector<256x128xbf16>
    tpu.vector_store %arg6[%c0_11, %c0_12], %14 {strides = array<i32>} : memref<256x128xbf16, #tpu.memory_space<vmem>>, vector<256x128xbf16>,
    return
  }
  func.func @transform_0(%arg0: i32) -> (i32, i32) {
    %c0_i32 = arith.constant 0 : i32
    %c0_i32_0 = arith.constant 0 : i32
    return %arg0, %c0_i32 : i32, i32
  }
  func.func @transform_1(%arg0: i32) -> (i32, i32) {
    %c0_i32 = arith.constant 0 : i32
    %c0_i32_0 = arith.constant 0 : i32
    %c0_i32_1 = arith.constant 0 : i32
    return %c0_i32, %c0_i32_0 : i32, i32
  }
  func.func @transform_2(%arg0: i32) -> (i32, i32) {
    %c0_i32 = arith.constant 0 : i32
    %c0_i32_0 = arith.constant 0 : i32
    %c0_i32_1 = arith.constant 0 : i32
    return %c0_i32, %c0_i32_0 : i32, i32
  }
  func.func @transform_3(%arg0: i32) -> (i32, i32) {
    %c0_i32 = arith.constant 0 : i32
    %c0_i32_0 = arith.constant 0 : i32
    %c0_i32_1 = arith.constant 0 : i32
    return %c0_i32, %c0_i32_0 : i32, i32
  }
  func.func @transform_4(%arg0: i32) -> (i32, i32) {
    %c0_i32 = arith.constant 0 : i32
    %c0_i32_0 = arith.constant 0 : i32
    %c0_i32_1 = arith.constant 0 : i32
    return %c0_i32, %c0_i32_0 : i32, i32
  }
  func.func @transform_5(%arg0: i32) -> (i32, i32) {
    %c0_i32 = arith.constant 0 : i32
    %c0_i32_0 = arith.constant 0 : i32
    return %arg0, %c0_i32 : i32, i32
  }
}

</mosaic_0001>

<llo_original>
// kernel: trace_wrapper_forward.1
$region0: #{trace_wrapper_forward.1}
  #allocation0 [shape = 'u32[]', space=smem, size = 0x4, offset = 0x4, fixed_abs, tag = 'smem constant byte address 0x4 - core index']
  #allocation1 [shape = 'u32[72,128]{1,0:T(1,128)}', space=vmem, size = 0x9000, scoped, tag = 'internal scratch']
  %s0 = inlined_call_operand.vmem [shape: bf16[1024,27], index: 0, kind: input, shape index: {}]
  %s1 = inlined_call_operand.vmem [shape: bf16[27,32], index: 1, kind: input, shape index: {}]
  %s2 = inlined_call_operand.vmem [shape: f32[1,32], index: 2, kind: input, shape index: {}]
  %s3 = inlined_call_operand.vmem [shape: bf16[32,128], index: 3, kind: input, shape index: {}]
  %s4 = inlined_call_operand.vmem [shape: f32[1,128], index: 4, kind: input, shape index: {}]
  %s5 = inlined_call_operand.vmem [shape: bf16[1024,128], index: 5, kind: output, shape index: {}]
  %s6 = sld [smem:[#allocation0]]
  $region53: #{trace_wrapper_forward.1} parent=0
    _
  %s8 = ssub.s32 1, %s6
  %s9 = scalar_select 0, %s8, %s6
  loop: start=0, step=1, limit=6
  $region2: #{trace_wrapper_forward.1} parent=0 // loop_pre_header
    _
  $region3: #{trace_wrapper_forward.1} parent=0 // loop_header
    %s11 = sphi 0, %s15
    %p12 = scmp.ge.s32.totalorder %s11, 6
    %s21 = sphi 0, %s23
    %s24 = sphi 0, %s21
    %s25 = sphi 0, %s24
    %s41 = sphi 0, %s25
    %s45 = sphi 0, %s45
    %s47 = sphi 0, %s45
    %s48 = sphi 0, %s47
    %s62 = sphi 0, %s48
    %s66 = sphi 0, %s66
    %s68 = sphi 0, %s66
    %s69 = sphi 0, %s68
    %s83 = sphi 0, %s69
    %s87 = sphi 0, %s87
    %s89 = sphi 0, %s87
    %s90 = sphi 0, %s89
    %s104 = sphi 0, %s90
    %s108 = sphi 0, %s108
    %s110 = sphi 0, %s108
    %s111 = sphi 0, %s110
    %s125 = sphi 0, %s111
    %s131 = sphi 0, %s133
    %s134 = sphi 0, %s131
    %s135 = sphi 0, %s134
    %s151 = sphi 0, %s135
  $region4: #{trace_wrapper_forward.1} parent=0 // loop_header_branch
    %14 = sbr.rel (%p12) target = $region8
  $region5: #{trace_wrapper_forward.1} parent=0 // loop_body
    %s16 = ssub.s32 %s11, 1
    %s17 = ssub.s32 %s11, 2
    %s18 = sadd.s32 %s11, 1
    %s19 = ssub.s32 %s11, %s18
    %p20 = scmp.eq.s32.totalorder %s19, 0
    %s22 = sadd.s32 %s21, 1
    %s23 = scalar_select %p20, %s21, %s22
    %p26 = pneg %p20
    %p27 = scmp.eq.s32.totalorder %s11, 3
    %p28 = por %p26, %p27
    %p29 = scmp.ne.s32.totalorder %s21, %s24
    %p30 = scmp.eq.s32.totalorder %s11, 0
    %p31 = por %p29, %p30
    %p32 = scmp.ne.s32.totalorder %s21, %s24
    %p33 = scmp.eq.s32.totalorder %s16, 3
    %p34 = por %p32, %p33
    %p35 = scmp.ne.s32.totalorder %s24, %s25
    %p36 = scmp.eq.s32.totalorder %s16, 0
    %p37 = por %p35, %p36
    %p38 = scmp.ne.s32.totalorder %s24, %s25
    %p39 = scmp.eq.s32.totalorder %s17, 3
    %p40 = por %p38, %p39
    %p42 = scmp.ne.s32.totalorder %s25, %s41
    %p43 = scmp.eq.s32.totalorder %s17, 0
    %p44 = por %p42, %p43
    %s46 = sadd.s32 %s45, 1
    %p49 = scmp.eq.s32.totalorder %s11, 3
    %p50 = scmp.ne.s32.totalorder %s45, %s47
    %p51 = scmp.eq.s32.totalorder %s11, 0
    %p52 = por %p50, %p51
    %p53 = scmp.ne.s32.totalorder %s45, %s47
    %p54 = scmp.eq.s32.totalorder %s16, 3
    %p55 = por %p53, %p54
    %p56 = scmp.ne.s32.totalorder %s47, %s48
    %p57 = scmp.eq.s32.totalorder %s16, 0
    %p58 = por %p56, %p57
    %p59 = scmp.ne.s32.totalorder %s47, %s48
    %p60 = scmp.eq.s32.totalorder %s17, 3
    %p61 = por %p59, %p60
    %p63 = scmp.ne.s32.totalorder %s48, %s62
    %p64 = scmp.eq.s32.totalorder %s17, 0
    %p65 = por %p63, %p64
    %s67 = sadd.s32 %s66, 1
    %p70 = scmp.eq.s32.totalorder %s11, 3
    %p71 = scmp.ne.s32.totalorder %s66, %s68
    %p72 = scmp.eq.s32.totalorder %s11, 0
    %p73 = por %p71, %p72
    %p74 = scmp.ne.s32.totalorder %s66, %s68
    %p75 = scmp.eq.s32.totalorder %s16, 3
    %p76 = por %p74, %p75
    %p77 = scmp.ne.s32.totalorder %s68, %s69
    %p78 = scmp.eq.s32.totalorder %s16, 0
    %p79 = por %p77, %p78
    %p80 = scmp.ne.s32.totalorder %s68, %s69
    %p81 = scmp.eq.s32.totalorder %s17, 3
    %p82 = por %p80, %p81
    %p84 = scmp.ne.s32.totalorder %s69, %s83
    %p85 = scmp.eq.s32.totalorder %s17, 0
    %p86 = por %p84, %p85
    %s88 = sadd.s32 %s87, 1
    %p91 = scmp.eq.s32.totalorder %s11, 3
    %p92 = scmp.ne.s32.totalorder %s87, %s89
    %p93 = scmp.eq.s32.totalorder %s11, 0
    %p94 = por %p92, %p93
    %p95 = scmp.ne.s32.totalorder %s87, %s89
    %p96 = scmp.eq.s32.totalorder %s16, 3
    %p97 = por %p95, %p96
    %p98 = scmp.ne.s32.totalorder %s89, %s90
    %p99 = scmp.eq.s32.totalorder %s16, 0
    %p100 = por %p98, %p99
    %p101 = scmp.ne.s32.totalorder %s89, %s90
    %p102 = scmp.eq.s32.totalorder %s17, 3
    %p103 = por %p101, %p102
    %p105 = scmp.ne.s32.totalorder %s90, %s104
    %p106 = scmp.eq.s32.totalorder %s17, 0
    %p107 = por %p105, %p106
    %s109 = sadd.s32 %s108, 1
    %p112 = scmp.eq.s32.totalorder %s11, 3
    %p113 = scmp.ne.s32.totalorder %s108, %s110
    %p114 = scmp.eq.s32.totalorder %s11, 0
    %p115 = por %p113, %p114
    %p116 = scmp.ne.s32.totalorder %s108, %s110
    %p117 = scmp.eq.s32.totalorder %s16, 3
    %p118 = por %p116, %p117
    %p119 = scmp.ne.s32.totalorder %s110, %s111
    %p120 = scmp.eq.s32.totalorder %s16, 0
    %p121 = por %p119, %p120
    %p122 = scmp.ne.s32.totalorder %s110, %s111
    %p123 = scmp.eq.s32.totalorder %s17, 3
    %p124 = por %p122, %p123
    %p126 = scmp.ne.s32.totalorder %s111, %s125
    %p127 = scmp.eq.s32.totalorder %s17, 0
    %p128 = por %p126, %p127
    %s129 = ssub.s32 %s11, %s18
    %p130 = scmp.eq.s32.totalorder %s129, 0
    %s132 = sadd.s32 %s131, 1
    %s133 = scalar_select %p130, %s131, %s132
    %p136 = pneg %p130
    %p137 = scmp.eq.s32.totalorder %s11, 3
    %p138 = por %p136, %p137
    %p139 = scmp.ne.s32.totalorder %s131, %s134
    %p140 = scmp.eq.s32.totalorder %s11, 0
    %p141 = por %p139, %p140
    %p142 = scmp.ne.s32.totalorder %s131, %s134
    %p143 = scmp.eq.s32.totalorder %s16, 3
    %p144 = por %p142, %p143
    %p145 = scmp.ne.s32.totalorder %s134, %s135
    %p146 = scmp.eq.s32.totalorder %s16, 0
    %p147 = por %p145, %p146
    %p148 = scmp.ne.s32.totalorder %s134, %s135
    %p149 = scmp.eq.s32.totalorder %s17, 3
    %p150 = por %p148, %p149
    %p152 = scmp.ne.s32.totalorder %s135, %s151
    %p153 = scmp.eq.s32.totalorder %s17, 0
    %p154 = por %p152, %p153
    %p155 = scmp.le.s32.totalorder 1, %s11
    %p156 = scmp.lt.s32.totalorder %s11, 5
    %p157 = pnand %p155, %p156
    %p158 = pneg %p157
    // Predicated region
    $region9: #{trace_wrapper_forward.1} parent=5 // pred_check
      _
    $region10: #{trace_wrapper_forward.1} parent=5 // pred_check_branch
      %160 = sbr.rel (%p157) target = $region12
    $region11: #{trace_wrapper_forward.1} parent=5 // pred_region
      %s161 = ssub.s32 %s11, 1
      // Predicated region
      $region13: #{trace_wrapper_forward.1} parent=11 // pred_check
        %p162 = pneg %p58
      $region14: #{trace_wrapper_forward.1} parent=11 // pred_check_branch
        %164 = sbr.rel (%p162) target = $region16
      $region15: #{trace_wrapper_forward.1} parent=11 // pred_region
        _
      $region16: #{trace_wrapper_forward.1} parent=11 // pred_fallthru
        _
      // Predicated region
      $region17: #{trace_wrapper_forward.1} parent=11 // pred_check
        %p165 = pneg %p79
      $region18: #{trace_wrapper_forward.1} parent=11 // pred_check_branch
        %167 = sbr.rel (%p165) target = $region20
      $region19: #{trace_wrapper_forward.1} parent=11 // pred_region
        _
      $region20: #{trace_wrapper_forward.1} parent=11 // pred_fallthru
        _
      // Predicated region
      $region21: #{trace_wrapper_forward.1} parent=11 // pred_check
        %p168 = pneg %p100
      $region22: #{trace_wrapper_forward.1} parent=11 // pred_check_branch
        %170 = sbr.rel (%p168) target = $region24
      $region23: #{trace_wrapper_forward.1} parent=11 // pred_region
        _
      $region24: #{trace_wrapper_forward.1} parent=11 // pred_fallthru
        _
      // Predicated region
      $region25: #{trace_wrapper_forward.1} parent=11 // pred_check
        %p171 = pneg %p121
      $region26: #{trace_wrapper_forward.1} parent=11 // pred_check_branch
        %173 = sbr.rel (%p171) target = $region28
      $region27: #{trace_wrapper_forward.1} parent=11 // pred_region
        _
      $region28: #{trace_wrapper_forward.1} parent=11 // pred_fallthru
        _
    $region12: #{trace_wrapper_forward.1} parent=5 // pred_fallthru
      _
    %p174 = scmp.lt.s32.totalorder %s11, 4
    // Predicated region
    $region29: #{trace_wrapper_forward.1} parent=5 // pred_check
      %p175 = pneg %p174
    $region30: #{trace_wrapper_forward.1} parent=5 // pred_check_branch
      %177 = sbr.rel (%p175) target = $region32
    $region31: #{trace_wrapper_forward.1} parent=5 // pred_region
      // Predicated region
      $region33: #{trace_wrapper_forward.1} parent=31 // pred_check
        %p178 = pneg %p31
      $region34: #{trace_wrapper_forward.1} parent=31 // pred_check_branch
        %180 = sbr.rel (%p178) target = $region36
      $region35: #{trace_wrapper_forward.1} parent=31 // pred_region
        %s181 = smul.u32 32, %s11
        %p182 = scmp.lt.s32.totalorder %s181, 127
        %s183 = scalar_select %p182, %s181, 127
        %s184 = smul.addr %s183, 4
        %s185 = scalar_lea.vmem %s0, %s184
        %s186 = smul.u32 32, %s11
      $region36: #{trace_wrapper_forward.1} parent=31 // pred_fallthru
        _
    $region32: #{trace_wrapper_forward.1} parent=5 // pred_fallthru
      _
    %p187 = scmp.le.s32.totalorder 1, %s11
    %p188 = scmp.lt.s32.totalorder %s11, 5
    %p189 = pnand %p187, %p188
    %p190 = pneg %p189
    // Predicated region
    $region37: #{trace_wrapper_forward.1} parent=5 // pred_check
      _
    $region38: #{trace_wrapper_forward.1} parent=5 // pred_check_branch
      %192 = sbr.rel (%p189) target = $region40
    $region39: #{trace_wrapper_forward.1} parent=5 // pred_region
      %s193 = ssub.s32 %s11, 1
      %s194 = smul.u32 32, %s16
      %p195 = scmp.lt.s32.totalorder %s194, 127
      %s196 = scalar_select %p195, %s194, 127
      %s197 = smul.addr %s196, 4
      %s198 = scalar_lea.vmem %s0, %s197
      %p199 = pneg %p37
      %p200 = pneg %p34
      %p201 = pneg %p58
      %p202 = pneg %p55
      %p203 = pneg %p79
      %p204 = pneg %p76
      %p205 = pneg %p100
      %p206 = pneg %p97
      %p207 = pneg %p121
      %p208 = pneg %p118
      %p209 = pneg %p147
      %p210 = pneg %p144
      %s211 = smul.u32 32, %s16
      %p212 = scmp.lt.s32.totalorder %s211, 127
      %s213 = scalar_select %p212, %s211, 127
      %s214 = smul.addr %s213, 4
      %s215 = scalar_lea.vmem %s5, %s214
      %s216 = smul.u32 32, %s16
      %p217 = scmp.lt.s32.totalorder %s216, 127
      %s218 = scalar_select %p217, %s216, 127
      %s219 = smul.addr %s218, 4
      %s220 = scalar_lea.vmem %s0, %s219
      %s221 = smul.u32 32, %s16
      %s222 = smul.u32 32, %s16
      %p223 = scmp.lt.s32.totalorder %s222, 127
      %s224 = scalar_select %p223, %s222, 127
      %s225 = smul.addr %s224, 4
      %s226 = scalar_lea.vmem %s5, %s225
      %s227 = smul.u32 32, %s16
      %v229 = vld [vmem:[%s220] sm:$0xf]
      %v230 = vld [vmem:[%s220 + $0x4] sm:$0xf]
      %v231 = vld [vmem:[%s220 + $0x8] sm:$0xf]
      %v232 = vld [vmem:[%s220 + $0xc] sm:$0xf]
      %v233 = vld [vmem:[%s220 + $0x10] sm:$0xf]
      %v234 = vld [vmem:[%s220 + $0x14] sm:$0xf]
      %v235 = vld [vmem:[%s220 + $0x18] sm:$0xf]
      %v236 = vld [vmem:[%s220 + $0x1c] sm:$0xf]
      %v237 = vld [vmem:[%s220 + $0x20] sm:$0xf]
      %v238 = vld [vmem:[%s220 + $0x24] sm:$0xf]
      %v239 = vld [vmem:[%s220 + $0x28] sm:$0xf]
      %v240 = vld [vmem:[%s220 + $0x2c] sm:$0xf]
      %v241 = vld [vmem:[%s220 + $0x30] sm:$0xf]
      %v242 = vld [vmem:[%s220 + $0x34] sm:$0xf]
      %v243 = vld [vmem:[%s220 + $0x38] sm:$0xf]
      %v244 = vld [vmem:[%s220 + $0x3c] sm:$0xf]
      %v245 = vld [vmem:[%s220 + $0x40] sm:$0xf]
      %v246 = vld [vmem:[%s220 + $0x44] sm:$0xf]
      %v247 = vld [vmem:[%s220 + $0x48] sm:$0xf]
      %v248 = vld [vmem:[%s220 + $0x4c] sm:$0xf]
      %v249 = vld [vmem:[%s220 + $0x50] sm:$0xf]
      %v250 = vld [vmem:[%s220 + $0x54] sm:$0xf]
      %v251 = vld [vmem:[%s220 + $0x58] sm:$0xf]
      %v252 = vld [vmem:[%s220 + $0x5c] sm:$0xf]
      %v253 = vld [vmem:[%s220 + $0x60] sm:$0xf]
      %v254 = vld [vmem:[%s220 + $0x64] sm:$0xf]
      %v255 = vld [vmem:[%s220 + $0x68] sm:$0xf]
      %v256 = vld [vmem:[%s220 + $0x6c] sm:$0xf]
      %v257 = vld [vmem:[%s220 + $0x70] sm:$0xf]
      %v258 = vld [vmem:[%s220 + $0x74] sm:$0xf]
      %v259 = vld [vmem:[%s220 + $0x78] sm:$0xf]
      %v260 = vld [vmem:[%s220 + $0x7c] sm:$0xf]
      %v261 = vld [vmem:[%s1] sm:$0xf]
      %v262 = vld [vmem:[%s1 + $0x4] sm:$0xf]
      %v263 = vld [vmem:[%s1 + $0x8] sm:$0xf]
      %v264 = vld [vmem:[%s1 + $0xc] sm:$0x3]
      %v265 = vld [vmem:[%s2] sm:$0x1]
      %v267 = vperm.slane %v265, 0
      %v301 = vunpack.c.l.b16 %v229
      %v302 = vunpack.c.l.b16 %v230
      %v303 = vunpack.c.l.b16 %v231
      %v304 = vunpack.c.l.b16 %v232
      %v305 = vunpack.c.l.b16 %v233
      %v306 = vunpack.c.l.b16 %v234
      %v307 = vunpack.c.l.b16 %v235
      %v308 = vunpack.c.l.b16 %v236
      %v309 = vunpack.c.l.b16 %v237
      %v310 = vunpack.c.l.b16 %v238
      %v311 = vunpack.c.l.b16 %v239
      %v312 = vunpack.c.l.b16 %v240
      %v313 = vunpack.c.l.b16 %v241
      %v314 = vunpack.c.l.b16 %v242
      %v315 = vunpack.c.l.b16 %v243
      %v316 = vunpack.c.l.b16 %v244
      %v317 = vunpack.c.l.b16 %v245
      %v318 = vunpack.c.l.b16 %v246
      %v319 = vunpack.c.l.b16 %v247
      %v320 = vunpack.c.l.b16 %v248
      %v321 = vunpack.c.l.b16 %v249
      %v322 = vunpack.c.l.b16 %v250
      %v323 = vunpack.c.l.b16 %v251
      %v324 = vunpack.c.l.b16 %v252
      %v325 = vunpack.c.l.b16 %v253
      %v326 = vunpack.c.l.b16 %v254
      %v327 = vunpack.c.l.b16 %v255
      %v328 = vunpack.c.l.b16 %v256
      %v329 = vunpack.c.l.b16 %v257
      %v330 = vunpack.c.l.b16 %v258
      %v331 = vunpack.c.l.b16 %v259
      %v332 = vunpack.c.l.b16 %v260
      %v333 = vpack.c.b16 %v302, %v301
      %v334 = vpack.c.b16 %v304, %v303
      %v335 = vpack.c.b16 %v306, %v305
      %v336 = vpack.c.b16 %v308, %v307
      %v337 = vpack.c.b16 %v310, %v309
      %v338 = vpack.c.b16 %v312, %v311
      %v339 = vpack.c.b16 %v314, %v313
      %v340 = vpack.c.b16 %v316, %v315
      %v341 = vpack.c.b16 %v318, %v317
      %v342 = vpack.c.b16 %v320, %v319
      %v343 = vpack.c.b16 %v322, %v321
      %v344 = vpack.c.b16 %v324, %v323
      %v345 = vpack.c.b16 %v326, %v325
      %v346 = vpack.c.b16 %v328, %v327
      %v347 = vpack.c.b16 %v330, %v329
      %v348 = vpack.c.b16 %v332, %v331
      %v353 = vunpack.c.l.b16 %v261
      %v354 = vunpack.c.l.b16 %v262
      %v355 = vunpack.c.l.b16 %v263
      %v356 = vunpack.c.l.b16 %v264
      %v357 = vpack.c.b16 %v354, %v353
      %v358 = vpack.c.b16 %v356, %v355
      %vm360 = vcmask 220160
      %v362 = vsel %vm360, %v333, 0
      %v365 = vsel %vm360, %v334, 0
      %v368 = vsel %vm360, %v335, 0
      %v371 = vsel %vm360, %v336, 0
      %v374 = vsel %vm360, %v337, 0
      %v377 = vsel %vm360, %v338, 0
      %v380 = vsel %vm360, %v339, 0
      %v383 = vsel %vm360, %v340, 0
      %v386 = vsel %vm360, %v341, 0
      %v389 = vsel %vm360, %v342, 0
      %v392 = vsel %vm360, %v343, 0
      %v395 = vsel %vm360, %v344, 0
      %v398 = vsel %vm360, %v345, 0
      %v401 = vsel %vm360, %v346, 0
      %v404 = vsel %vm360, %v347, 0
      %v407 = vsel %vm360, %v348, 0
      %vm409 = vcmask 1044480
      %vm410 = vcmask 1045504
      %v411 = vsel %vm409, 4294967295, 65535
      %v412 = vsel %vm410, %v411, 0
      %v414 = vand.u32 %v358, %v412
      %416 = vmatpush.bf16.msra.mxu0 0
      %417 = vmatpush.bf16.msra.mxu0 0
      %418 = vmatpush.bf16.msra.mxu0 0
      %419 = vmatpush.bf16.msra.mxu0 0
      %420 = vmatpush.bf16.msra.mxu0 0
      %421 = vmatpush.bf16.msra.mxu0 0
      %422 = vmatpush.bf16.msra.mxu0 %v414
      %423 = vmatpush.bf16.msra.mxu0 %v357
      %424 = vmatmul.bf16.gmra.mxu0 %v362
      %v425 = vpop.f32.mrf.mxu0
      %v426 = vadd.f32 %v267, %v425
      %v427 = vpop.f32.mrf.mxu0
      %v428 = vadd.f32 %v267, %v427
      %429 = vmatmul.bf16.gmra.mxu0 %v365
      %v430 = vpop.f32.mrf.mxu0
      %v431 = vadd.f32 %v267, %v430
      %v432 = vpop.f32.mrf.mxu0
      %v433 = vadd.f32 %v267, %v432
      %434 = vmatmul.bf16.gmra.mxu0 %v368
      %v435 = vpop.f32.mrf.mxu0
      %v436 = vadd.f32 %v267, %v435
      %v437 = vpop.f32.mrf.mxu0
      %v438 = vadd.f32 %v267, %v437
      %439 = vmatmul.bf16.gmra.mxu0 %v371
      %v440 = vpop.f32.mrf.mxu0
      %v441 = vadd.f32 %v267, %v440
      %v442 = vpop.f32.mrf.mxu0
      %v443 = vadd.f32 %v267, %v442
      %444 = vmatmul.bf16.gmra.mxu0 %v374
      %v445 = vpop.f32.mrf.mxu0
      %v446 = vadd.f32 %v267, %v445
      %v447 = vpop.f32.mrf.mxu0
      %v448 = vadd.f32 %v267, %v447
      %449 = vmatmul.bf16.gmra.mxu0 %v377
      %v450 = vpop.f32.mrf.mxu0
      %v451 = vadd.f32 %v267, %v450
      %v452 = vpop.f32.mrf.mxu0
      %v453 = vadd.f32 %v267, %v452
      %454 = vmatmul.bf16.gmra.mxu0 %v380
      %v455 = vpop.f32.mrf.mxu0
      %v456 = vadd.f32 %v267, %v455
      %v457 = vpop.f32.mrf.mxu0
      %v458 = vadd.f32 %v267, %v457
      %459 = vmatmul.bf16.gmra.mxu0 %v383
      %v460 = vpop.f32.mrf.mxu0
      %v461 = vadd.f32 %v267, %v460
      %v462 = vpop.f32.mrf.mxu0
      %v463 = vadd.f32 %v267, %v462
      %464 = vmatmul.bf16.gmra.mxu0 %v386
      %v465 = vpop.f32.mrf.mxu0
      %v466 = vadd.f32 %v267, %v465
      %v467 = vpop.f32.mrf.mxu0
      %v468 = vadd.f32 %v267, %v467
      %469 = vmatmul.bf16.gmra.mxu0 %v389
      %v470 = vpop.f32.mrf.mxu0
      %v471 = vadd.f32 %v267, %v470
      %v472 = vpop.f32.mrf.mxu0
      %v473 = vadd.f32 %v267, %v472
      %474 = vmatmul.bf16.gmra.mxu0 %v392
      %v475 = vpop.f32.mrf.mxu0
      %v476 = vadd.f32 %v267, %v475
      %v477 = vpop.f32.mrf.mxu0
      %v478 = vadd.f32 %v267, %v477
      %479 = vmatmul.bf16.gmra.mxu0 %v395
      %v480 = vpop.f32.mrf.mxu0
      %v481 = vadd.f32 %v267, %v480
      %v482 = vpop.f32.mrf.mxu0
      %v483 = vadd.f32 %v267, %v482
      %484 = vmatmul.bf16.gmra.mxu0 %v398
      %v485 = vpop.f32.mrf.mxu0
      %v486 = vadd.f32 %v267, %v485
      %v487 = vpop.f32.mrf.mxu0
      %v488 = vadd.f32 %v267, %v487
      %489 = vmatmul.bf16.gmra.mxu0 %v401
      %v490 = vpop.f32.mrf.mxu0
      %v491 = vadd.f32 %v267, %v490
      %v492 = vpop.f32.mrf.mxu0
      %v493 = vadd.f32 %v267, %v492
      %494 = vmatmul.bf16.gmra.mxu0 %v404
      %v495 = vpop.f32.mrf.mxu0
      %v496 = vadd.f32 %v267, %v495
      %v497 = vpop.f32.mrf.mxu0
      %v498 = vadd.f32 %v267, %v497
      %499 = vmatmul.bf16.gmra.mxu0 %v407
      %v500 = vpop.f32.mrf.mxu0
      %v501 = vadd.f32 %v267, %v500
      %v502 = vpop.f32.mrf.mxu0
      %v503 = vadd.f32 %v267, %v502
      %504 = vdwg.mxu0
      %v505 = vmax.f32 %v426, 0.0
      %v506 = vmax.f32 %v428, 0.0
      %v507 = vmax.f32 %v431, 0.0
      %v508 = vmax.f32 %v433, 0.0
      %v509 = vmax.f32 %v436, 0.0
      %v510 = vmax.f32 %v438, 0.0
      %v511 = vmax.f32 %v441, 0.0
      %v512 = vmax.f32 %v443, 0.0
      %v513 = vmax.f32 %v446, 0.0
      %v514 = vmax.f32 %v448, 0.0
      %v515 = vmax.f32 %v451, 0.0
      %v516 = vmax.f32 %v453, 0.0
      %v517 = vmax.f32 %v456, 0.0
      %v518 = vmax.f32 %v458, 0.0
      %v519 = vmax.f32 %v461, 0.0
      %v520 = vmax.f32 %v463, 0.0
      %v521 = vmax.f32 %v466, 0.0
      %v522 = vmax.f32 %v468, 0.0
      %v523 = vmax.f32 %v471, 0.0
      %v524 = vmax.f32 %v473, 0.0
      %v525 = vmax.f32 %v476, 0.0
      %v526 = vmax.f32 %v478, 0.0
      %v527 = vmax.f32 %v481, 0.0
      %v528 = vmax.f32 %v483, 0.0
      %v529 = vmax.f32 %v486, 0.0
      %v530 = vmax.f32 %v488, 0.0
      %v531 = vmax.f32 %v491, 0.0
      %v532 = vmax.f32 %v493, 0.0
      %v533 = vmax.f32 %v496, 0.0
      %v534 = vmax.f32 %v498, 0.0
      %v535 = vmax.f32 %v501, 0.0
      %v536 = vmax.f32 %v503, 0.0
      %v537 = vpack.c.bf16 %v506, %v505
      %v538 = vpack.c.bf16 %v508, %v507
      %v539 = vpack.c.bf16 %v510, %v509
      %v540 = vpack.c.bf16 %v512, %v511
      %v541 = vpack.c.bf16 %v514, %v513
      %v542 = vpack.c.bf16 %v516, %v515
      %v543 = vpack.c.bf16 %v518, %v517
      %v544 = vpack.c.bf16 %v520, %v519
      %v545 = vpack.c.bf16 %v522, %v521
      %v546 = vpack.c.bf16 %v524, %v523
      %v547 = vpack.c.bf16 %v526, %v525
      %v548 = vpack.c.bf16 %v528, %v527
      %v549 = vpack.c.bf16 %v530, %v529
      %v550 = vpack.c.bf16 %v532, %v531
      %v551 = vpack.c.bf16 %v534, %v533
      %v552 = vpack.c.bf16 %v536, %v535
      %v553 = vld [vmem:[%s3] sm:$0xf]
      %v554 = vld [vmem:[%s3 + $0x4] sm:$0xf]
      %v555 = vld [vmem:[%s3 + $0x8] sm:$0xf]
      %v556 = vld [vmem:[%s3 + $0xc] sm:$0xf]
      %v557 = vld [vmem:[%s4] sm:$0x1]
      %v559 = vperm.slane %v557, 0
      %v565 = vunpack.c.l.b16 %v553
      %v566 = vunpack.c.l.b16 %v554
      %v567 = vunpack.c.l.b16 %v555
      %v568 = vunpack.c.l.b16 %v556
      %v569 = vpack.c.b16 %v566, %v565
      %v570 = vpack.c.b16 %v568, %v567
      %vm573 = vcmask 261120
      %v575 = vsel %vm573, %v537, 0
      %v578 = vsel %vm573, %v538, 0
      %v581 = vsel %vm573, %v539, 0
      %v584 = vsel %vm573, %v540, 0
      %v587 = vsel %vm573, %v541, 0
      %v590 = vsel %vm573, %v542, 0
      %v593 = vsel %vm573, %v543, 0
      %v596 = vsel %vm573, %v544, 0
      %v599 = vsel %vm573, %v545, 0
      %v602 = vsel %vm573, %v546, 0
      %v605 = vsel %vm573, %v547, 0
      %v608 = vsel %vm573, %v548, 0
      %v611 = vsel %vm573, %v549, 0
      %v614 = vsel %vm573, %v550, 0
      %v617 = vsel %vm573, %v551, 0
      %v620 = vsel %vm573, %v552, 0
      %622 = vmatpush.bf16.msra.mxu0 0
      %623 = vmatpush.bf16.msra.mxu0 0
      %624 = vmatpush.bf16.msra.mxu0 0
      %625 = vmatpush.bf16.msra.mxu0 0
      %626 = vmatpush.bf16.msra.mxu0 0
      %627 = vmatpush.bf16.msra.mxu0 0
      %628 = vmatpush.bf16.msra.mxu0 %v570
      %629 = vmatpush.bf16.msra.mxu0 %v569
      %630 = vmatmul.bf16.gmra.mxu0 %v575
      %v631 = vpop.f32.mrf.mxu0
      %v632 = vadd.f32 %v559, %v631
      %v633 = vpop.f32.mrf.mxu0
      %v634 = vadd.f32 %v559, %v633
      %635 = vmatmul.bf16.gmra.mxu0 %v578
      %v636 = vpop.f32.mrf.mxu0
      %v637 = vadd.f32 %v559, %v636
      %v638 = vpop.f32.mrf.mxu0
      %v639 = vadd.f32 %v559, %v638
      %640 = vmatmul.bf16.gmra.mxu0 %v581
      %v641 = vpop.f32.mrf.mxu0
      %v642 = vadd.f32 %v559, %v641
      %v643 = vpop.f32.mrf.mxu0
      %v644 = vadd.f32 %v559, %v643
      %645 = vmatmul.bf16.gmra.mxu0 %v584
      %v646 = vpop.f32.mrf.mxu0
      %v647 = vadd.f32 %v559, %v646
      %v648 = vpop.f32.mrf.mxu0
      %v649 = vadd.f32 %v559, %v648
      %650 = vmatmul.bf16.gmra.mxu0 %v587
      %v651 = vpop.f32.mrf.mxu0
      %v652 = vadd.f32 %v559, %v651
      %v653 = vpop.f32.mrf.mxu0
      %v654 = vadd.f32 %v559, %v653
      %655 = vmatmul.bf16.gmra.mxu0 %v590
      %v656 = vpop.f32.mrf.mxu0
      %v657 = vadd.f32 %v559, %v656
      %v658 = vpop.f32.mrf.mxu0
      %v659 = vadd.f32 %v559, %v658
      %660 = vmatmul.bf16.gmra.mxu0 %v593
      %v661 = vpop.f32.mrf.mxu0
      %v662 = vadd.f32 %v559, %v661
      %v663 = vpop.f32.mrf.mxu0
      %v664 = vadd.f32 %v559, %v663
      %665 = vmatmul.bf16.gmra.mxu0 %v596
      %v666 = vpop.f32.mrf.mxu0
      %v667 = vadd.f32 %v559, %v666
      %v668 = vpop.f32.mrf.mxu0
      %v669 = vadd.f32 %v559, %v668
      %670 = vmatmul.bf16.gmra.mxu0 %v599
      %v671 = vpop.f32.mrf.mxu0
      %v672 = vadd.f32 %v559, %v671
      %v673 = vpop.f32.mrf.mxu0
      %v674 = vadd.f32 %v559, %v673
      %675 = vmatmul.bf16.gmra.mxu0 %v602
      %v676 = vpop.f32.mrf.mxu0
      %v677 = vadd.f32 %v559, %v676
      %v678 = vpop.f32.mrf.mxu0
      %v679 = vadd.f32 %v559, %v678
      %680 = vmatmul.bf16.gmra.mxu0 %v605
      %v681 = vpop.f32.mrf.mxu0
      %v682 = vadd.f32 %v559, %v681
      %v683 = vpop.f32.mrf.mxu0
      %v684 = vadd.f32 %v559, %v683
      %685 = vmatmul.bf16.gmra.mxu0 %v608
      %v686 = vpop.f32.mrf.mxu0
      %v687 = vadd.f32 %v559, %v686
      %v688 = vpop.f32.mrf.mxu0
      %v689 = vadd.f32 %v559, %v688
      %690 = vmatmul.bf16.gmra.mxu0 %v611
      %v691 = vpop.f32.mrf.mxu0
      %v692 = vadd.f32 %v559, %v691
      %v693 = vpop.f32.mrf.mxu0
      %v694 = vadd.f32 %v559, %v693
      %695 = vmatmul.bf16.gmra.mxu0 %v614
      %v696 = vpop.f32.mrf.mxu0
      %v697 = vadd.f32 %v559, %v696
      %v698 = vpop.f32.mrf.mxu0
      %v699 = vadd.f32 %v559, %v698
      %700 = vmatmul.bf16.gmra.mxu0 %v617
      %v701 = vpop.f32.mrf.mxu0
      %v702 = vadd.f32 %v559, %v701
      %v703 = vpop.f32.mrf.mxu0
      %v704 = vadd.f32 %v559, %v703
      %705 = vmatmul.bf16.gmra.mxu0 %v620
      %v706 = vpop.f32.mrf.mxu0
      %v707 = vadd.f32 %v559, %v706
      %v708 = vpop.f32.mrf.mxu0
      %v709 = vadd.f32 %v559, %v708
      %710 = vdwg.mxu0
      %v711 = vpack.c.bf16 %v632, %v632
      %v712 = vpack.c.bf16 %v634, %v634
      %v713 = vpack.c.bf16 %v637, %v637
      %v714 = vpack.c.bf16 %v639, %v639
      %v715 = vpack.c.bf16 %v642, %v642
      %v716 = vpack.c.bf16 %v644, %v644
      %v717 = vpack.c.bf16 %v647, %v647
      %v718 = vpack.c.bf16 %v649, %v649
      %v719 = vpack.c.bf16 %v652, %v652
      %v720 = vpack.c.bf16 %v654, %v654
      %v721 = vpack.c.bf16 %v657, %v657
      %v722 = vpack.c.bf16 %v659, %v659
      %v723 = vpack.c.bf16 %v662, %v662
      %v724 = vpack.c.bf16 %v664, %v664
      %v725 = vpack.c.bf16 %v667, %v667
      %v726 = vpack.c.bf16 %v669, %v669
      %v727 = vpack.c.bf16 %v672, %v672
      %v728 = vpack.c.bf16 %v674, %v674
      %v729 = vpack.c.bf16 %v677, %v677
      %v730 = vpack.c.bf16 %v679, %v679
      %v731 = vpack.c.bf16 %v682, %v682
      %v732 = vpack.c.bf16 %v684, %v684
      %v733 = vpack.c.bf16 %v687, %v687
      %v734 = vpack.c.bf16 %v689, %v689
      %v735 = vpack.c.bf16 %v692, %v692
      %v736 = vpack.c.bf16 %v694, %v694
      %v737 = vpack.c.bf16 %v697, %v697
      %v738 = vpack.c.bf16 %v699, %v699
      %v739 = vpack.c.bf16 %v702, %v702
      %v740 = vpack.c.bf16 %v704, %v704
      %v741 = vpack.c.bf16 %v707, %v707
      %v742 = vpack.c.bf16 %v709, %v709
      %743 = vst [vmem:[%s226] sm:$0xf] %v711
      %744 = vst [vmem:[%s226 + $0x4] sm:$0xf] %v712
      %745 = vst [vmem:[%s226 + $0x8] sm:$0xf] %v713
      %746 = vst [vmem:[%s226 + $0xc] sm:$0xf] %v714
      %747 = vst [vmem:[%s226 + $0x10] sm:$0xf] %v715
      %748 = vst [vmem:[%s226 + $0x14] sm:$0xf] %v716
      %749 = vst [vmem:[%s226 + $0x18] sm:$0xf] %v717
      %750 = vst [vmem:[%s226 + $0x1c] sm:$0xf] %v718
      %751 = vst [vmem:[%s226 + $0x20] sm:$0xf] %v719
      %752 = vst [vmem:[%s226 + $0x24] sm:$0xf] %v720
      %753 = vst [vmem:[%s226 + $0x28] sm:$0xf] %v721
      %754 = vst [vmem:[%s226 + $0x2c] sm:$0xf] %v722
      %755 = vst [vmem:[%s226 + $0x30] sm:$0xf] %v723
      %756 = vst [vmem:[%s226 + $0x34] sm:$0xf] %v724
      %757 = vst [vmem:[%s226 + $0x38] sm:$0xf] %v725
      %758 = vst [vmem:[%s226 + $0x3c] sm:$0xf] %v726
      %759 = vst [vmem:[%s226 + $0x40] sm:$0xf] %v727
      %760 = vst [vmem:[%s226 + $0x44] sm:$0xf] %v728
      %761 = vst [vmem:[%s226 + $0x48] sm:$0xf] %v729
      %762 = vst [vmem:[%s226 + $0x4c] sm:$0xf] %v730
      %763 = vst [vmem:[%s226 + $0x50] sm:$0xf] %v731
      %764 = vst [vmem:[%s226 + $0x54] sm:$0xf] %v732
      %765 = vst [vmem:[%s226 + $0x58] sm:$0xf] %v733
      %766 = vst [vmem:[%s226 + $0x5c] sm:$0xf] %v734
      %767 = vst [vmem:[%s226 + $0x60] sm:$0xf] %v735
      %768 = vst [vmem:[%s226 + $0x64] sm:$0xf] %v736
      %769 = vst [vmem:[%s226 + $0x68] sm:$0xf] %v737
      %770 = vst [vmem:[%s226 + $0x6c] sm:$0xf] %v738
      %771 = vst [vmem:[%s226 + $0x70] sm:$0xf] %v739
      %772 = vst [vmem:[%s226 + $0x74] sm:$0xf] %v740
      %773 = vst [vmem:[%s226 + $0x78] sm:$0xf] %v741
      %774 = vst [vmem:[%s226 + $0x7c] sm:$0xf] %v742
      %s775 = smul.u32 32, %s16
      %p776 = scmp.lt.s32.totalorder %s775, 127
      %s777 = scalar_select %p776, %s775, 127
      %s778 = smul.addr %s777, 4
      %s779 = scalar_lea.vmem %s5, %s778
      // Predicated region
      $region41: #{trace_wrapper_forward.1} parent=39 // pred_check
        %p780 = pneg %p144
      $region42: #{trace_wrapper_forward.1} parent=39 // pred_check_branch
        %782 = sbr.rel (%p780) target = $region44
      $region43: #{trace_wrapper_forward.1} parent=39 // pred_region
        %s783 = smul.u32 32, %s16
      $region44: #{trace_wrapper_forward.1} parent=39 // pred_fallthru
        _
    $region40: #{trace_wrapper_forward.1} parent=5 // pred_fallthru
      _
    %p784 = scmp.le.s32.totalorder 2, %s11
    // Predicated region
    $region45: #{trace_wrapper_forward.1} parent=5 // pred_check
      %p785 = pneg %p784
    $region46: #{trace_wrapper_forward.1} parent=5 // pred_check_branch
      %787 = sbr.rel (%p785) target = $region48
    $region47: #{trace_wrapper_forward.1} parent=5 // pred_region
      %s788 = ssub.s32 %s11, 2
      // Predicated region
      $region49: #{trace_wrapper_forward.1} parent=47 // pred_check
        %p789 = pneg %p150
      $region50: #{trace_wrapper_forward.1} parent=47 // pred_check_branch
        %791 = sbr.rel (%p789) target = $region52
      $region51: #{trace_wrapper_forward.1} parent=47 // pred_region
        %s792 = smul.u32 32, %s17
        %p793 = scmp.lt.s32.totalorder %s792, 127
        %s794 = scalar_select %p793, %s792, 127
        %s795 = smul.addr %s794, 4
        %s796 = scalar_lea.vmem %s5, %s795
      $region52: #{trace_wrapper_forward.1} parent=47 // pred_fallthru
        _
    $region48: #{trace_wrapper_forward.1} parent=5 // pred_fallthru
      _
  $region6: #{trace_wrapper_forward.1} parent=0 // loop_footer
    %s15 = sadd.s32 1, %s11
  $region7: #{trace_wrapper_forward.1} parent=0 // loop_footer_branch
    %10 = sbr.rel target = $region3
  $region8: #{trace_wrapper_forward.1} parent=0 // loop_exit
    _

</llo_original>
